<compile_context>
chip_gen: v6e
topology: v6e:2x2x1
jax: 0.10.0
libtpu: 0.0.40
codegen_flags: <defaults>
</compile_context>

<pallas_src>
import functools

import jax
import jax.numpy as jnp
from jax.experimental import pallas as pl
from jax.experimental.pallas import tpu as pltpu

FRAMEWORK_NAMES = [
    "utilitarian", "deontological", "virtue_ethics", "care_ethics", "justice_theory",
]
PRINCIPLE_NAMES = [
    "autonomy", "beneficence", "non_maleficence", "justice",
    "dignity", "fairness", "transparency", "accountability",
]
N_FRAMEWORK = len(FRAMEWORK_NAMES)
N_HEADS = N_FRAMEWORK + len(PRINCIPLE_NAMES)     # 13 fused single-logit heads
N_STAKE, N_RISK, N_CONF = 10, 5, 1
N_SMALL = N_STAKE + N_RISK + N_CONF              # 16 fused stage-2 outputs
SLAB_W = 128                                     # lane-dense output slab width
HEAD_OFF = N_SMALL                               # heads live at slab lanes [16, 29)


def _round_up(n: int, m: int) -> int:
    return ((n + m - 1) // m) * m


def _floor_pow2(n: int) -> int:
    return 1 << (max(int(n), 1).bit_length() - 1)


# --------------------------------------------------------------------------- #
# Kernel
# --------------------------------------------------------------------------- #
def _ethical_kernel(x_ref,
                    w0_ref, b0_ref, w1_ref, b1_ref,   # moral_encoder (2x Linear+ReLU)
                    wA_ref, bA_ref,                   # fused stage-1 (H, s1_pad + 128)
                    wB_ref, bB_ref,                   # fused stage-2 block-diag (s1_pad, 16)
                    *out_refs):
    if len(out_refs) == 2:
        feat_ref, slab_ref = out_refs
    else:
        feat_ref = None
        (slab_ref,) = out_refs

    s1_pad = wB_ref.shape[0]          # 128-aligned width of the ReLU region of wA
    cd = w0_ref.dtype                 # matmul compute dtype (f32 or bf16)

    x = x_ref[...]                    # already cast to `cd` in the wrapper (narrow DMA)

    # moral_encoder: Linear -> ReLU -> (Dropout=id) -> Linear -> ReLU -> (Dropout=id)
    h = jnp.dot(x, w0_ref[...], preferred_element_type=jnp.float32) + b0_ref[...]
    h = jnp.maximum(h, 0.0)
    h = jnp.dot(h.astype(cd), w1_ref[...], preferred_element_type=jnp.float32) + b1_ref[...]
    h = jnp.maximum(h, 0.0)
    if feat_ref is not None:
        feat_ref[...] = h.astype(feat_ref.dtype)

    # Fused stage-1: one wide matmul.  Layout of wA columns:
    #   [0:s1)        = ws1 | wr1 | wc1      (ReLU path feeding stage-2)
    #   [s1:s1_pad)   = zero padding (128-aligned boundary)
    #   [s1_pad:+128) = head lane group: zeros, heads at local lanes [16:29), zeros.
    z = jnp.dot(h.astype(cd), wA_ref[...], preferred_element_type=jnp.float32) + bA_ref[...]
    t = jnp.maximum(z[:, :s1_pad], 0.0)   # 128-aligned slice (padded cols stay 0)
    zh = z[:, s1_pad:]                     # 128-aligned (TB, 128); head logits at lanes 16:29

    # Fused stage-2: block-diagonal matmul -> [stake(10) | risk(5) | confidence(1)].
    z2 = jnp.dot(t.astype(cd), wB_ref[...], preferred_element_type=jnp.float32) + bB_ref[...]

    # Emit the slab with zero cross-lane shuffles:
    #   1) one unmasked full-lane-group store (heads land at slab lanes 16:29;
    #      lanes 29:128 hold sigmoid(0)=0.5 don't-care values, never read),
    #   2) one lane-0-aligned 16-lane masked store for stake/risk/confidence.
    slab_ref[...] = jax.nn.sigmoid(zh).astype(slab_ref.dtype)
    slab_ref[:, 0:N_SMALL] = jax.nn.sigmoid(z2).astype(slab_ref.dtype)


# --------------------------------------------------------------------------- #
# Parameters
# --------------------------------------------------------------------------- #
def init_params(key, input_dim: int, hidden_dim: int):
    """Deterministic parameter init, mimicking PyTorch Linear's U(-1/sqrt(fan_in), +)."""
    def linear(k, fan_in, fan_out):
        kw, kb = jax.random.split(k)
        bound = 1.0 / jnp.sqrt(fan_in)
        w = jax.random.uniform(kw, (fan_in, fan_out), jnp.float32, -bound, bound)
        b = jax.random.uniform(kb, (1, fan_out), jnp.float32, -bound, bound)
        return w, b

    keys = jax.random.split(key, 8)
    h2, h4 = hidden_dim // 2, hidden_dim // 4
    p = {}
    p["w0"], p["b0"] = linear(keys[0], input_dim, hidden_dim)
    p["w1"], p["b1"] = linear(keys[1], hidden_dim, hidden_dim)
    p["wh"], p["bh"] = linear(keys[2], hidden_dim, N_HEADS)        # fused 13 heads
    p["ws1"], p["bs1"] = linear(keys[3], hidden_dim, h2)
    p["ws2"], p["bs2"] = linear(keys[4], h2, N_STAKE)
    p["wr1"], p["br1"] = linear(keys[5], hidden_dim, h2)
    p["wr2"], p["br2"] = linear(keys[6], h2, N_RISK)
    p["wc1"], p["bc1"] = linear(keys[7], hidden_dim, h4)
    kc2 = jax.random.fold_in(key, 999)
    p["wc2"], p["bc2"] = linear(kc2, h4, N_CONF)
    return p


def prepare_fused_params(p, compute_dtype=jnp.float32):
    """Build the fused, lane-aligned stage-1 / block-diagonal stage-2 weights once."""
    H = p["w0"].shape[1]
    h2, h4 = H // 2, H // 4
    s1 = 2 * h2 + h4
    s1_pad = _round_up(s1, 128)

    # Stage-1 fused weight (H, s1_pad + 128): ReLU region + padded head lane group.
    wA = jnp.zeros((H, s1_pad + SLAB_W), jnp.float32)
    wA = wA.at[:, 0:h2].set(p["ws1"])
    wA = wA.at[:, h2:2 * h2].set(p["wr1"])
    wA = wA.at[:, 2 * h2:s1].set(p["wc1"])
    wA = wA.at[:, s1_pad + HEAD_OFF:s1_pad + HEAD_OFF + N_HEADS].set(p["wh"])

    bA = jnp.zeros((1, s1_pad + SLAB_W), jnp.float32)
    bA = bA.at[:, 0:h2].set(p["bs1"])
    bA = bA.at[:, h2:2 * h2].set(p["br1"])
    bA = bA.at[:, 2 * h2:s1].set(p["bc1"])
    bA = bA.at[:, s1_pad + HEAD_OFF:s1_pad + HEAD_OFF + N_HEADS].set(p["bh"])

    # Stage-2 block-diagonal weight (s1_pad, 16); padded rows are zero.
    wB = jnp.zeros((s1_pad, N_SMALL), jnp.float32)
    wB = wB.at[0:h2, 0:N_STAKE].set(p["ws2"])
    wB = wB.at[h2:2 * h2, N_STAKE:N_STAKE + N_RISK].set(p["wr2"])
    wB = wB.at[2 * h2:s1, N_STAKE + N_RISK:N_SMALL].set(p["wc2"])
    bB = jnp.concatenate([p["bs2"], p["br2"], p["bc2"]], axis=1)

    cd = compute_dtype
    return {
        "w0": p["w0"].astype(cd), "b0": p["b0"],
        "w1": p["w1"].astype(cd), "b1": p["b1"],
        "wA": wA.astype(cd), "bA": bA,
        "wB": wB.astype(cd), "bB": bB,
    }


# --------------------------------------------------------------------------- #
# Tiling
# --------------------------------------------------------------------------- #
def _pick_batch_tile(B: int, max_tile: int, min_grid_steps: int, min_tile: int) -> int:
    """Largest power-of-two row tile <= max_tile that covers B, capped so the grid
    has >= min_grid_steps steps when the batch allows it (v7x has 2 TensorCores).
    Any B is supported — the wrapper pads rows to a tile multiple, so there is no
    divisor-dependent perf cliff."""
    tile = min(max_tile, pl.next_power_of_2(max(B, min_tile)))
    if min_grid_steps > 1 and B >= min_grid_steps * min_tile:
        tile = min(tile, max(min_tile, _floor_pow2(B // min_grid_steps)))
    return max(tile, min_tile)


# --------------------------------------------------------------------------- #
# Forward
# --------------------------------------------------------------------------- #
@functools.partial(
    jax.jit,
    static_argnames=("return_fused_heads", "return_moral_features", "out_dtype",
                     "max_batch_tile", "min_grid_steps"))
def ethical_reasoning_forward(x, fp,
                              return_fused_heads: bool = False,
                              return_moral_features: bool = True,
                              out_dtype=jnp.float32,
                              max_batch_tile: int = 1024,
                              min_grid_steps: int = 2):
    B, D = x.shape
    H = fp["w0"].shape[1]
    s1_pad = fp["wB"].shape[0]
    cd = fp["w0"].dtype

    # Cast x in the WRAPPER so the input DMA itself is narrower in bf16 mode
    # (the kernel is HBM-bound; x is ~half of the per-row traffic).
    if x.dtype != cd:
        x = x.astype(cd)

    # Sub-32-bit streamed blocks need >= 16 sublanes (packed-dtype tiling).
    min_tile = 8
    if jnp.dtype(cd).itemsize < 4 or jnp.dtype(out_dtype).itemsize < 4:
        min_tile = 16

    TB = _pick_batch_tile(B, max_batch_tile, min_grid_steps, min_tile)
    grid_steps = pl.cdiv(B, TB)
    B_pad = TB * grid_steps
    if B_pad != B:
        x = jnp.pad(x, ((0, B_pad - B), (0, 0)))

    def resident(arr):
        # Constant index_map: DMA'd once, stays resident in VMEM across grid steps.
        return pl.BlockSpec(arr.shape, lambda i: (0, 0))

    in_specs = [
        pl.BlockSpec((TB, D), lambda i: (i, 0)),              # x streams per row tile
        resident(fp["w0"]), resident(fp["b0"]),
        resident(fp["w1"]), resident(fp["b1"]),
        resident(fp["wA"]), resident(fp["bA"]),
        resident(fp["wB"]), resident(fp["bB"]),
    ]

    slab_spec = pl.BlockSpec((TB, SLAB_W), lambda i: (i, 0))
    slab_shape = jax.ShapeDtypeStruct((B_pad, SLAB_W), out_dtype)
    if return_moral_features:
        out_specs = [pl.BlockSpec((TB, H), lambda i: (i, 0)), slab_spec]
        out_shapes = (jax.ShapeDtypeStruct((B_pad, H), out_dtype), slab_shape)
    else:
        out_specs = [slab_spec]
        out_shapes = (slab_shape,)

    # Advisory cost estimate so XLA schedules around this mem-bound custom call.
    in_itemsize = jnp.dtype(cd).itemsize
    out_itemsize = jnp.dtype(out_dtype).itemsize
    weight_bytes = sum(int(fp[k].size) * jnp.dtype(fp[k].dtype).itemsize
                       for k in ("w0", "b0", "w1", "b1", "wA", "bA", "wB", "bB"))
    bytes_accessed = (B_pad * D * in_itemsize + weight_bytes
                      + B_pad * SLAB_W * out_itemsize
                      + (B_pad * H * out_itemsize if return_moral_features else 0))
    cost = pl.CostEstimate(
        flops=2 * B_pad * (D * H + H * H + H * (s1_pad + SLAB_W) + s1_pad * N_SMALL),
        transcendentals=B_pad * (SLAB_W + N_SMALL),
        bytes_accessed=bytes_accessed)

    outs = pl.pallas_call(
        _ethical_kernel,
        grid=(grid_steps,),
        in_specs=in_specs,
        out_specs=out_specs,
        out_shape=out_shapes,
        compiler_params=pltpu.CompilerParams(
            dimension_semantics=("parallel",),
            vmem_limit_bytes=48 * 1024 * 1024,
        ),
        cost_estimate=cost,
    )(x, fp["w0"], fp["b0"], fp["w1"], fp["b1"],
      fp["wA"], fp["bA"], fp["wB"], fp["bB"])

    if return_moral_features:
        feat, slab = outs
        feat = feat[:B]
    else:
        slab = outs[0] if isinstance(outs, (list, tuple)) else outs
        feat = None
    slab = slab[:B]

    stake = slab[:, 0:N_STAKE]
    risk = slab[:, N_STAKE:N_STAKE + N_RISK]
    conf = slab[:, N_STAKE + N_RISK:N_SMALL]
    heads = slab[:, HEAD_OFF:HEAD_OFF + N_HEADS]

    if return_fused_heads:
        framework_scores = heads[:, :N_FRAMEWORK]
        principle_scores = heads[:, N_FRAMEWORK:]
    else:
        framework_scores = {
            name: heads[:, i:i + 1] for i, name in enumerate(FRAMEWORK_NAMES)
        }
        principle_scores = {
            name: heads[:, N_FRAMEWORK + i:N_FRAMEWORK + i + 1]
            for i, name in enumerate(PRINCIPLE_NAMES)
        }

    return {
        "framework_scores": framework_scores,
        "principle_scores": principle_scores,
        "stakeholder_impacts": stake,
        "risk_scores": risk,
        "confidence": conf,
        "moral_features": feat,   # None when return_moral_features=False (perf opt)
    }


# --------------------------------------------------------------------------- #
# Pure-JAX reference (unfused weights) for correctness checks
# --------------------------------------------------------------------------- #
def _reference_forward(x, p):
    h = jnp.maximum(x @ p["w0"] + p["b0"], 0.0)
    h = jnp.maximum(h @ p["w1"] + p["b1"], 0.0)
    heads = jax.nn.sigmoid(h @ p["wh"] + p["bh"])
    stake = jax.nn.sigmoid(jnp.maximum(h @ p["ws1"] + p["bs1"], 0.0) @ p["ws2"] + p["bs2"])
    risk = jax.nn.sigmoid(jnp.maximum(h @ p["wr1"] + p["br1"], 0.0) @ p["wr2"] + p["br2"])
    conf = jax.nn.sigmoid(jnp.maximum(h @ p["wc1"] + p["bc1"], 0.0) @ p["wc2"] + p["bc2"])
    return h, heads, stake, risk, conf


if __name__ == "__main__":
    # Small shapes consistent with the module (input_dim=256, hidden_dim=128).
    B, INPUT_DIM, HIDDEN_DIM = 8, 256, 128

    key = jax.random.PRNGKey(0)
    kx, kp = jax.random.split(key)
    x = jax.random.normal(kx, (B, INPUT_DIM), dtype=jnp.float32)

    raw_params = init_params(kp, INPUT_DIM, HIDDEN_DIM)
    fused_f32 = prepare_fused_params(raw_params, compute_dtype=jnp.float32)

    # 1) f32 compute, exact-fit batch.
    out = ethical_reasoning_forward(x, fused_f32)
    jax.block_until_ready(out)

    h_ref, heads_ref, stake_ref, risk_ref, conf_ref = _reference_forward(x, raw_params)
    assert jnp.allclose(out["moral_features"], h_ref, atol=1e-4, rtol=1e-4)
    assert jnp.allclose(out["stakeholder_impacts"], stake_ref, atol=1e-5, rtol=1e-5)
    assert jnp.allclose(out["risk_scores"], risk_ref, atol=1e-5, rtol=1e-5)
    assert jnp.allclose(out["confidence"], conf_ref, atol=1e-5, rtol=1e-5)
    assert jnp.allclose(out["framework_scores"]["utilitarian"], heads_ref[:, 0:1], atol=1e-5)
    assert jnp.allclose(out["principle_scores"]["accountability"], heads_ref[:, 12:13], atol=1e-5)

    # 2) f32 compute, ragged batch (no power-of-two divisor): exercises the
    #    multi-step grid + wrapper row padding (no tiny-tile perf cliff).
    xr = jax.random.normal(jax.random.fold_in(key, 7), (40, INPUT_DIM), dtype=jnp.float32)
    out_r = ethical_reasoning_forward(xr, fused_f32)
    jax.block_until_ready(out_r)
    hr, headsr, staker, riskr, confr = _reference_forward(xr, raw_params)
    assert out_r["moral_features"].shape == (40, HIDDEN_DIM)
    assert jnp.allclose(out_r["moral_features"], hr, atol=1e-4, rtol=1e-4)
    assert jnp.allclose(out_r["stakeholder_impacts"], staker, atol=1e-5, rtol=1e-5)
    assert jnp.allclose(out_r["risk_scores"], riskr, atol=1e-5, rtol=1e-5)
    assert jnp.allclose(out_r["confidence"], confr, atol=1e-5, rtol=1e-5)
    assert jnp.allclose(out_r["framework_scores"]["utilitarian"], headsr[:, 0:1], atol=1e-5)

    # 3) bf16 compute path: x cast in the wrapper (half the input DMA), fused
    #    head matrices, moral_features output skipped.  f32 accumulation; loose
    #    tolerance because activations are cast to bf16 between layers.
    fused_bf16 = prepare_fused_params(raw_params, compute_dtype=jnp.bfloat16)
    out_bf = ethical_reasoning_forward(x, fused_bf16, return_fused_heads=True,
                                       return_moral_features=False)
    jax.block_until_ready(out_bf["confidence"])
    assert out_bf["moral_features"] is None
    assert float(jnp.max(jnp.abs(out_bf["stakeholder_impacts"] - stake_ref))) < 5e-2
    assert float(jnp.max(jnp.abs(out_bf["risk_scores"] - risk_ref))) < 5e-2
    assert float(jnp.max(jnp.abs(out_bf["framework_scores"] - heads_ref[:, :N_FRAMEWORK]))) < 5e-2
    assert float(jnp.max(jnp.abs(out_bf["principle_scores"] - heads_ref[:, N_FRAMEWORK:]))) < 5e-2

    print("KERNEL_OK")
</pallas_src>

<mosaic_0001>
module attributes {stable_mosaic.version = 11 : i64} {
  func.func @_ethical_kernel(%arg0: i32, %arg1: memref<8x256xf32, #tpu.memory_space<vmem>>, %arg2: memref<256x128xf32, #tpu.memory_space<vmem>>, %arg3: memref<1x128xf32, #tpu.memory_space<vmem>>, %arg4: memref<128x128xf32, #tpu.memory_space<vmem>>, %arg5: memref<1x128xf32, #tpu.memory_space<vmem>>, %arg6: memref<128x384xf32, #tpu.memory_space<vmem>>, %arg7: memref<1x384xf32, #tpu.memory_space<vmem>>, %arg8: memref<256x16xf32, #tpu.memory_space<vmem>>, %arg9: memref<1x16xf32, #tpu.memory_space<vmem>>, %arg10: memref<8x128xf32, #tpu.memory_space<vmem>>, %arg11: memref<8x128xf32, #tpu.memory_space<vmem>>) attributes {dimension_semantics = [#tpu.dimension_semantics<parallel>], iteration_bounds = array<i64: 1>, scalar_prefetch = 0 : i64, scratch_operands = 0 : i64, tpu.core_type = #tpu.core_type<tc>, window_params = [{transform_indices = @transform_0, window_bounds = array<i64: 8, 256>}, {pipeline_mode = #tpu.pipeline_mode<synchronous>, transform_indices = @transform_1, window_bounds = array<i64: 256, 128>}, {pipeline_mode = #tpu.pipeline_mode<synchronous>, transform_indices = @transform_2, window_bounds = array<i64: 1, 128>}, {pipeline_mode = #tpu.pipeline_mode<synchronous>, transform_indices = @transform_3, window_bounds = array<i64: 128, 128>}, {pipeline_mode = #tpu.pipeline_mode<synchronous>, transform_indices = @transform_4, window_bounds = array<i64: 1, 128>}, {pipeline_mode = #tpu.pipeline_mode<synchronous>, transform_indices = @transform_5, window_bounds = array<i64: 128, 384>}, {pipeline_mode = #tpu.pipeline_mode<synchronous>, transform_indices = @transform_6, window_bounds = array<i64: 1, 384>}, {pipeline_mode = #tpu.pipeline_mode<synchronous>, transform_indices = @transform_7, window_bounds = array<i64: 256, 16>}, {pipeline_mode = #tpu.pipeline_mode<synchronous>, transform_indices = @transform_8, window_bounds = array<i64: 1, 16>}, {transform_indices = @transform_9, window_bounds = array<i64: 8, 128>}, {transform_indices = @transform_10, window_bounds = array<i64: 8, 128>}]} {
    %c0 = arith.constant 0 : index
    %c0_0 = arith.constant 0 : index
    %0 = vector.load %arg1[%c0, %c0_0] : memref<8x256xf32, #tpu.memory_space<vmem>>, vector<8x256xf32>
    %c0_1 = arith.constant 0 : index
    %c0_2 = arith.constant 0 : index
    %1 = vector.load %arg2[%c0_1, %c0_2] : memref<256x128xf32, #tpu.memory_space<vmem>>, vector<256x128xf32>
    %cst = arith.constant dense<0.000000e+00> : vector<8x128xf32>
    %2 = tpu.matmul %0, %1, %cst {dimension_numbers = #tpu.dot_dimension_numbers<[1], [0], [0], [1], [0, 0, 1, 1], [], []>} : vector<8x256xf32>, vector<256x128xf32>, vector<8x128xf32> -> vector<8x128xf32>
    %c0_3 = arith.constant 0 : index
    %c0_4 = arith.constant 0 : index
    %3 = vector.load %arg3[%c0_3, %c0_4] : memref<1x128xf32, #tpu.memory_space<vmem>>, vector<1x128xf32>
    %4 = vector.broadcast %3 : vector<1x128xf32> to vector<8x128xf32>
    %5 = arith.addf %2, %4 : vector<8x128xf32>
    %cst_5 = arith.constant 0.000000e+00 : f32
    %6 = vector.broadcast %cst_5 : f32 to vector<8x128xf32>
    %7 = arith.maximumf %5, %6 : vector<8x128xf32>
    %c0_6 = arith.constant 0 : index
    %c0_7 = arith.constant 0 : index
    %8 = vector.load %arg4[%c0_6, %c0_7] : memref<128x128xf32, #tpu.memory_space<vmem>>, vector<128x128xf32>
    %cst_8 = arith.constant dense<0.000000e+00> : vector<8x128xf32>
    %9 = tpu.matmul %7, %8, %cst_8 {dimension_numbers = #tpu.dot_dimension_numbers<[1], [0], [0], [1], [0, 0, 1, 1], [], []>} : vector<8x128xf32>, vector<128x128xf32>, vector<8x128xf32> -> vector<8x128xf32>
    %c0_9 = arith.constant 0 : index
    %c0_10 = arith.constant 0 : index
    %10 = vector.load %arg5[%c0_9, %c0_10] : memref<1x128xf32, #tpu.memory_space<vmem>>, vector<1x128xf32>
    %11 = vector.broadcast %10 : vector<1x128xf32> to vector<8x128xf32>
    %12 = arith.addf %9, %11 : vector<8x128xf32>
    %cst_11 = arith.constant 0.000000e+00 : f32
    %13 = vector.broadcast %cst_11 : f32 to vector<8x128xf32>
    %14 = arith.maximumf %12, %13 : vector<8x128xf32>
    %c0_12 = arith.constant 0 : index
    %c0_13 = arith.constant 0 : index
    %15 = vector.load %arg10[%c0_12, %c0_13] : memref<8x128xf32, #tpu.memory_space<vmem>>, vector<8x128xf32>
    tpu.vector_store %arg10[%c0_12, %c0_13], %14 {strides = array<i32>} : memref<8x128xf32, #tpu.memory_space<vmem>>, vector<8x128xf32>,
    %c0_14 = arith.constant 0 : index
    %c0_15 = arith.constant 0 : index
    %16 = vector.load %arg6[%c0_14, %c0_15] : memref<128x384xf32, #tpu.memory_space<vmem>>, vector<128x384xf32>
    %cst_16 = arith.constant dense<0.000000e+00> : vector<8x384xf32>
    %17 = tpu.matmul %14, %16, %cst_16 {dimension_numbers = #tpu.dot_dimension_numbers<[1], [0], [0], [1], [0, 0, 1, 1], [], []>} : vector<8x128xf32>, vector<128x384xf32>, vector<8x384xf32> -> vector<8x384xf32>
    %c0_17 = arith.constant 0 : index
    %c0_18 = arith.constant 0 : index
    %18 = vector.load %arg7[%c0_17, %c0_18] : memref<1x384xf32, #tpu.memory_space<vmem>>, vector<1x384xf32>
    %19 = vector.broadcast %18 : vector<1x384xf32> to vector<8x384xf32>
    %20 = arith.addf %17, %19 : vector<8x384xf32>
    %21 = vector.extract_strided_slice %20 {offsets = [0, 0], sizes = [8, 256], strides = [1, 1]} : vector<8x384xf32> to vector<8x256xf32>
    %cst_19 = arith.constant 0.000000e+00 : f32
    %22 = vector.broadcast %cst_19 : f32 to vector<8x256xf32>
    %23 = arith.maximumf %21, %22 : vector<8x256xf32>
    %24 = vector.extract_strided_slice %20 {offsets = [0, 256], sizes = [8, 128], strides = [1, 1]} : vector<8x384xf32> to vector<8x128xf32>
    %c0_20 = arith.constant 0 : index
    %c0_21 = arith.constant 0 : index
    %25 = vector.load %arg8[%c0_20, %c0_21] : memref<256x16xf32, #tpu.memory_space<vmem>>, vector<256x16xf32>
    %cst_22 = arith.constant dense<0.000000e+00> : vector<8x16xf32>
    %26 = tpu.matmul %23, %25, %cst_22 {dimension_numbers = #tpu.dot_dimension_numbers<[1], [0], [0], [1], [0, 0, 1, 1], [], []>} : vector<8x256xf32>, vector<256x16xf32>, vector<8x16xf32> -> vector<8x16xf32>
    %c0_23 = arith.constant 0 : index
    %c0_24 = arith.constant 0 : index
    %27 = vector.load %arg9[%c0_23, %c0_24] : memref<1x16xf32, #tpu.memory_space<vmem>>, vector<1x16xf32>
    %28 = vector.broadcast %27 : vector<1x16xf32> to vector<8x16xf32>
    %29 = arith.addf %26, %28 : vector<8x16xf32>
    %30 = arith.negf %24 : vector<8x128xf32>
    %31 = math.exp %30 : vector<8x128xf32>
    %cst_25 = arith.constant 1.000000e+00 : f32
    %32 = vector.broadcast %cst_25 : f32 to vector<8x128xf32>
    %33 = arith.addf %32, %31 : vector<8x128xf32>
    %34 = arith.divf %32, %33 : vector<8x128xf32>
    %c0_26 = arith.constant 0 : index
    %c0_27 = arith.constant 0 : index
    %35 = vector.load %arg11[%c0_26, %c0_27] : memref<8x128xf32, #tpu.memory_space<vmem>>, vector<8x128xf32>
    tpu.vector_store %arg11[%c0_26, %c0_27], %34 {strides = array<i32>} : memref<8x128xf32, #tpu.memory_space<vmem>>, vector<8x128xf32>,
    %36 = arith.negf %29 : vector<8x16xf32>
    %37 = math.exp %36 : vector<8x16xf32>
    %cst_28 = arith.constant 1.000000e+00 : f32
    %38 = vector.broadcast %cst_28 : f32 to vector<8x16xf32>
    %39 = arith.addf %38, %37 : vector<8x16xf32>
    %40 = arith.divf %38, %39 : vector<8x16xf32>
    %c0_29 = arith.constant 0 : index
    %c0_30 = arith.constant 0 : index
    %41 = vector.load %arg11[%c0_29, %c0_30] : memref<8x128xf32, #tpu.memory_space<vmem>>, vector<8x16xf32>
    tpu.vector_store %arg11[%c0_29, %c0_30], %40 {strides = array<i32>} : memref<8x128xf32, #tpu.memory_space<vmem>>, vector<8x16xf32>,
    return
  }
  func.func @transform_0(%arg0: i32) -> (i32, i32) {
    %c0_i32 = arith.constant 0 : i32
    %c0_i32_0 = arith.constant 0 : i32
    return %arg0, %c0_i32 : i32, i32
  }
  func.func @transform_1(%arg0: i32) -> (i32, i32) {
    %c0_i32 = arith.constant 0 : i32
    %c0_i32_0 = arith.constant 0 : i32
    %c0_i32_1 = arith.constant 0 : i32
    return %c0_i32, %c0_i32_0 : i32, i32
  }
  func.func @transform_2(%arg0: i32) -> (i32, i32) {
    %c0_i32 = arith.constant 0 : i32
    %c0_i32_0 = arith.constant 0 : i32
    %c0_i32_1 = arith.constant 0 : i32
    return %c0_i32, %c0_i32_0 : i32, i32
  }
  func.func @transform_3(%arg0: i32) -> (i32, i32) {
    %c0_i32 = arith.constant 0 : i32
    %c0_i32_0 = arith.constant 0 : i32
    %c0_i32_1 = arith.constant 0 : i32
    return %c0_i32, %c0_i32_0 : i32, i32
  }
  func.func @transform_4(%arg0: i32) -> (i32, i32) {
    %c0_i32 = arith.constant 0 : i32
    %c0_i32_0 = arith.constant 0 : i32
    %c0_i32_1 = arith.constant 0 : i32
    return %c0_i32, %c0_i32_0 : i32, i32
  }
  func.func @transform_5(%arg0: i32) -> (i32, i32) {
    %c0_i32 = arith.constant 0 : i32
    %c0_i32_0 = arith.constant 0 : i32
    %c0_i32_1 = arith.constant 0 : i32
    return %c0_i32, %c0_i32_0 : i32, i32
  }
  func.func @transform_6(%arg0: i32) -> (i32, i32) {
    %c0_i32 = arith.constant 0 : i32
    %c0_i32_0 = arith.constant 0 : i32
    %c0_i32_1 = arith.constant 0 : i32
    return %c0_i32, %c0_i32_0 : i32, i32
  }
  func.func @transform_7(%arg0: i32) -> (i32, i32) {
    %c0_i32 = arith.constant 0 : i32
    %c0_i32_0 = arith.constant 0 : i32
    %c0_i32_1 = arith.constant 0 : i32
    return %c0_i32, %c0_i32_0 : i32, i32
  }
  func.func @transform_8(%arg0: i32) -> (i32, i32) {
    %c0_i32 = arith.constant 0 : i32
    %c0_i32_0 = arith.constant 0 : i32
    %c0_i32_1 = arith.constant 0 : i32
    return %c0_i32, %c0_i32_0 : i32, i32
  }
  func.func @transform_9(%arg0: i32) -> (i32, i32) {
    %c0_i32 = arith.constant 0 : i32
    %c0_i32_0 = arith.constant 0 : i32
    return %arg0, %c0_i32 : i32, i32
  }
  func.func @transform_10(%arg0: i32) -> (i32, i32) {
    %c0_i32 = arith.constant 0 : i32
    %c0_i32_0 = arith.constant 0 : i32
    return %arg0, %c0_i32 : i32, i32
  }
}

</mosaic_0001>

<llo_original>
// kernel: ethical_reasoning_forward.1
$region0: #{ethical_reasoning_forward.1}
  #allocation0 [shape = 'u32[]', space=smem, size = 0x4, offset = 0x4, fixed_abs, tag = 'smem constant byte address 0x4 - core index']
  #allocation1 [shape = 'u32[144,128]{1,0:T(1,128)}', space=vmem, size = 0x12000, scoped, tag = 'internal scratch']
  %s0 = inlined_call_operand.vmem [shape: f32[8,256], index: 0, kind: input, shape index: {}]
  %s1 = inlined_call_operand.vmem [shape: f32[256,128], index: 1, kind: input, shape index: {}]
  %s2 = inlined_call_operand.vmem [shape: f32[1,128], index: 2, kind: input, shape index: {}]
  %s3 = inlined_call_operand.hbm [shape: f32[128,128], index: 3, kind: input, shape index: {}]
  %s4 = inlined_call_operand.vmem [shape: f32[1,128], index: 4, kind: input, shape index: {}]
  %s5 = inlined_call_operand.hbm [shape: f32[128,384], index: 5, kind: input, shape index: {}]
  %s6 = inlined_call_operand.vmem [shape: f32[1,384], index: 6, kind: input, shape index: {}]
  %s7 = inlined_call_operand.vmem [shape: f32[256,16], index: 7, kind: input, shape index: {}]
  %s8 = inlined_call_operand.vmem [shape: f32[1,16], index: 8, kind: input, shape index: {}]
  %s9 = inlined_call_operand.hbm [shape: f32[8,128], index: 9, kind: output, shape index: {0}]
  %s10 = inlined_call_operand.vmem [shape: f32[8,128], index: 10, kind: output, shape index: {1}]
  %11 = xla_tuple %s9, %s10
  %s12 = sld [smem:[#allocation0]]
  $region62: #{ethical_reasoning_forward.1} parent=0
    _
  %s14 = ssub.s32 1, %s12
  %s15 = scalar_select 0, %s14, %s12
  $region1: #{ethical_reasoning_forward.1} parent=0
    #allocation2 [shape = 'u8[65536]{0}', space=vmem, size = 0x10000, scoped, tag = 'input window, operand 3, single buffered']
    #allocation3 [shape = 's32[1]{0}', space=sflag, size = 0x4, scoped, tag = 'scoped memory for ethical_reasoning_forward.1']
    #allocation4 [shape = 's32[1]{0}', space=sflag, size = 0x4, scoped, tag = 'scoped memory for ethical_reasoning_forward.1']
    #allocation5 [shape = 'u8[196608]{0}', space=vmem, size = 0x30000, scoped, tag = 'input window, operand 5, single buffered']
    #allocation6 [shape = 's32[1]{0}', space=sflag, size = 0x4, scoped, tag = 'scoped memory for ethical_reasoning_forward.1']
    #allocation7 [shape = 'u8[4096]{0}', space=vmem, size = 0x1000, scoped, tag = 'output window, operand 0, single buffered']
    %16 = vsyncpa [#allocation3], 0
    %17 = vsyncpa [#allocation6], 0
    %18 = vsyncpa [#allocation4], 0
    // Predicated region
    $region2: #{ethical_reasoning_forward.1} parent=1 // pred_check
      _
    $region3: #{ethical_reasoning_forward.1} parent=1 // pred_check_branch
      %20 = sbr.rel (0) target = $region5
    $region4: #{ethical_reasoning_forward.1} parent=1 // pred_region
      _
    $region5: #{ethical_reasoning_forward.1} parent=1 // pred_fallthru
      _
    // Predicated region
    $region6: #{ethical_reasoning_forward.1} parent=1 // pred_check
      _
    $region7: #{ethical_reasoning_forward.1} parent=1 // pred_check_branch
      %22 = sbr.rel (0) target = $region9
    $region8: #{ethical_reasoning_forward.1} parent=1 // pred_region
      _
    $region9: #{ethical_reasoning_forward.1} parent=1 // pred_fallthru
      _
    // Predicated region
    $region10: #{ethical_reasoning_forward.1} parent=1 // pred_check
      _
    $region11: #{ethical_reasoning_forward.1} parent=1 // pred_check_branch
      %24 = sbr.rel (0) target = $region13
    $region12: #{ethical_reasoning_forward.1} parent=1 // pred_region
      _
    $region13: #{ethical_reasoning_forward.1} parent=1 // pred_fallthru
      _
    // Predicated region
    $region14: #{ethical_reasoning_forward.1} parent=1 // pred_check
      _
    $region15: #{ethical_reasoning_forward.1} parent=1 // pred_check_branch
      %26 = sbr.rel (0) target = $region17
    $region16: #{ethical_reasoning_forward.1} parent=1 // pred_region
      %s28 = ssub.s32 2048, 2048
      %29 = vsyncadd [#allocation3], %s28
      %s30 = sshll.u32 [#allocation2], 4
      %s31 = int_to_ptr.vmem [resolvable:$true] %s30
      %36 = dma.hbm_to_vmem [thread:$0]  %s3, 2048, %s31, [#allocation3], 128, 128, 8
    $region17: #{ethical_reasoning_forward.1} parent=1 // pred_fallthru
      _
    // Predicated region
    $region18: #{ethical_reasoning_forward.1} parent=1 // pred_check
      _
    $region19: #{ethical_reasoning_forward.1} parent=1 // pred_check_branch
      %38 = sbr.rel (0) target = $region21
    $region20: #{ethical_reasoning_forward.1} parent=1 // pred_region
      _
    $region21: #{ethical_reasoning_forward.1} parent=1 // pred_fallthru
      _
    // Predicated region
    $region22: #{ethical_reasoning_forward.1} parent=1 // pred_check
      _
    $region23: #{ethical_reasoning_forward.1} parent=1 // pred_check_branch
      %40 = sbr.rel (0) target = $region25
    $region24: #{ethical_reasoning_forward.1} parent=1 // pred_region
      %s42 = ssub.s32 6144, 6144
      %43 = vsyncadd [#allocation6], %s42
      %s44 = sshll.u32 [#allocation5], 4
      %s45 = int_to_ptr.vmem [resolvable:$true] %s44
      %50 = dma.hbm_to_vmem [thread:$0]  %s5, 6144, %s45, [#allocation6], 384, 384, 24
    $region25: #{ethical_reasoning_forward.1} parent=1 // pred_fallthru
      _
    // Predicated region
    $region26: #{ethical_reasoning_forward.1} parent=1 // pred_check
      _
    $region27: #{ethical_reasoning_forward.1} parent=1 // pred_check_branch
      %52 = sbr.rel (0) target = $region29
    $region28: #{ethical_reasoning_forward.1} parent=1 // pred_region
      _
    $region29: #{ethical_reasoning_forward.1} parent=1 // pred_fallthru
      _
    // Predicated region
    $region30: #{ethical_reasoning_forward.1} parent=1 // pred_check
      _
    $region31: #{ethical_reasoning_forward.1} parent=1 // pred_check_branch
      %54 = sbr.rel (0) target = $region33
    $region32: #{ethical_reasoning_forward.1} parent=1 // pred_region
      _
    $region33: #{ethical_reasoning_forward.1} parent=1 // pred_fallthru
      _
    // Predicated region
    $region34: #{ethical_reasoning_forward.1} parent=1 // pred_check
      _
    $region35: #{ethical_reasoning_forward.1} parent=1 // pred_check_branch
      %56 = sbr.rel (0) target = $region37
    $region36: #{ethical_reasoning_forward.1} parent=1 // pred_region
      _
    $region37: #{ethical_reasoning_forward.1} parent=1 // pred_fallthru
      _
    // Predicated region
    $region38: #{ethical_reasoning_forward.1} parent=1 // pred_check
      _
    $region39: #{ethical_reasoning_forward.1} parent=1 // pred_check_branch
      %58 = sbr.rel (0) target = $region41
    $region40: #{ethical_reasoning_forward.1} parent=1 // pred_region
      %59 = dma.done [#allocation3], 2048
    $region41: #{ethical_reasoning_forward.1} parent=1 // pred_fallthru
      _
    // Predicated region
    $region42: #{ethical_reasoning_forward.1} parent=1 // pred_check
      _
    $region43: #{ethical_reasoning_forward.1} parent=1 // pred_check_branch
      %61 = sbr.rel (0) target = $region45
    $region44: #{ethical_reasoning_forward.1} parent=1 // pred_region
      %62 = dma.done [#allocation6], 6144
    $region45: #{ethical_reasoning_forward.1} parent=1 // pred_fallthru
      _
    %v63 = vld [vmem:[%s0] sm:$0xff]
    %v64 = vld [vmem:[%s0 + $0x8] sm:$0xff]
    %v65 = vld [vmem:[%s1] sm:$0xff]
    %v66 = vld [vmem:[%s1 + $0x8] sm:$0xff]
    %v67 = vld [vmem:[%s1 + $0x10] sm:$0xff]
    %v68 = vld [vmem:[%s1 + $0x18] sm:$0xff]
    %v69 = vld [vmem:[%s1 + $0x20] sm:$0xff]
    %v70 = vld [vmem:[%s1 + $0x28] sm:$0xff]
    %v71 = vld [vmem:[%s1 + $0x30] sm:$0xff]
    %v72 = vld [vmem:[%s1 + $0x38] sm:$0xff]
    %v73 = vld [vmem:[%s1 + $0x40] sm:$0xff]
    %v74 = vld [vmem:[%s1 + $0x48] sm:$0xff]
    %v75 = vld [vmem:[%s1 + $0x50] sm:$0xff]
    %v76 = vld [vmem:[%s1 + $0x58] sm:$0xff]
    %v77 = vld [vmem:[%s1 + $0x60] sm:$0xff]
    %v78 = vld [vmem:[%s1 + $0x68] sm:$0xff]
    %v79 = vld [vmem:[%s1 + $0x70] sm:$0xff]
    %v80 = vld [vmem:[%s1 + $0x78] sm:$0xff]
    %v81 = vld [vmem:[%s1 + $0x80] sm:$0xff]
    %v82 = vld [vmem:[%s1 + $0x88] sm:$0xff]
    %v83 = vld [vmem:[%s1 + $0x90] sm:$0xff]
    %v84 = vld [vmem:[%s1 + $0x98] sm:$0xff]
    %v85 = vld [vmem:[%s1 + $0xa0] sm:$0xff]
    %v86 = vld [vmem:[%s1 + $0xa8] sm:$0xff]
    %v87 = vld [vmem:[%s1 + $0xb0] sm:$0xff]
    %v88 = vld [vmem:[%s1 + $0xb8] sm:$0xff]
    %v89 = vld [vmem:[%s1 + $0xc0] sm:$0xff]
    %v90 = vld [vmem:[%s1 + $0xc8] sm:$0xff]
    %v91 = vld [vmem:[%s1 + $0xd0] sm:$0xff]
    %v92 = vld [vmem:[%s1 + $0xd8] sm:$0xff]
    %v93 = vld [vmem:[%s1 + $0xe0] sm:$0xff]
    %v94 = vld [vmem:[%s1 + $0xe8] sm:$0xff]
    %v95 = vld [vmem:[%s1 + $0xf0] sm:$0xff]
    %v96 = vld [vmem:[%s1 + $0xf8] sm:$0xff]
    %v97 = vld [vmem:[%s2] sm:$0x1]
    %v99 = vlaneseq
    %v100 = vshrl.u32 %v99, 7
    %v101 = vsub.s32 0, %v100
    %v102 = vrot.slane %v97, %v101
    %104 = vmatprep.subr.mxu0 0.0
    %105 = vmatpush1.msra.mxu0 %v80
    %106 = vmatprep.subr.mxu0 0.0
    %107 = vmatpush1.msra.mxu0 %v79
    %108 = vmatprep.subr.mxu0 0.0
    %109 = vmatpush1.msra.mxu0 %v78
    %110 = vmatprep.subr.mxu0 0.0
    %111 = vmatpush1.msra.mxu0 %v77
    %112 = vmatprep.subr.mxu0 0.0
    %113 = vmatpush1.msra.mxu0 %v76
    %114 = vmatprep.subr.mxu0 0.0
    %115 = vmatpush1.msra.mxu0 %v75
    %116 = vmatprep.subr.mxu0 0.0
    %117 = vmatpush1.msra.mxu0 %v74
    %118 = vmatprep.subr.mxu0 0.0
    %119 = vmatpush1.msra.mxu0 %v73
    %120 = vmatprep.subr.mxu0 0.0
    %121 = vmatpush1.msra.mxu0 %v72
    %122 = vmatprep.subr.mxu0 0.0
    %123 = vmatpush1.msra.mxu0 %v71
    %124 = vmatprep.subr.mxu0 0.0
    %125 = vmatpush1.msra.mxu0 %v70
    %126 = vmatprep.subr.mxu0 0.0
    %127 = vmatpush1.msra.mxu0 %v69
    %128 = vmatprep.subr.mxu0 0.0
    %129 = vmatpush1.msra.mxu0 %v68
    %130 = vmatprep.subr.mxu0 0.0
    %131 = vmatpush1.msra.mxu0 %v67
    %132 = vmatprep.subr.mxu0 0.0
    %133 = vmatpush1.msra.mxu0 %v66
    %134 = vmatprep.subr.mxu0 0.0
    %135 = vmatpush1.msra.mxu0 %v65
    %136 = vmatprep.subr.mxu0 0.0
    %137 = vmatpush2.msra.mxu0 %v96
    %138 = vmatprep.subr.mxu0 0.0
    %139 = vmatpush2.msra.mxu0 %v95
    %140 = vmatprep.subr.mxu0 0.0
    %141 = vmatpush2.msra.mxu0 %v94
    %142 = vmatprep.subr.mxu0 0.0
    %143 = vmatpush2.msra.mxu0 %v93
    %144 = vmatprep.subr.mxu0 0.0
    %145 = vmatpush2.msra.mxu0 %v92
    %146 = vmatprep.subr.mxu0 0.0
    %147 = vmatpush2.msra.mxu0 %v91
    %148 = vmatprep.subr.mxu0 0.0
    %149 = vmatpush2.msra.mxu0 %v90
    %150 = vmatprep.subr.mxu0 0.0
    %151 = vmatpush2.msra.mxu0 %v89
    %152 = vmatprep.subr.mxu0 0.0
    %153 = vmatpush2.msra.mxu0 %v88
    %154 = vmatprep.subr.mxu0 0.0
    %155 = vmatpush2.msra.mxu0 %v87
    %156 = vmatprep.subr.mxu0 0.0
    %157 = vmatpush2.msra.mxu0 %v86
    %158 = vmatprep.subr.mxu0 0.0
    %159 = vmatpush2.msra.mxu0 %v85
    %160 = vmatprep.subr.mxu0 0.0
    %161 = vmatpush2.msra.mxu0 %v84
    %162 = vmatprep.subr.mxu0 0.0
    %163 = vmatpush2.msra.mxu0 %v83
    %164 = vmatprep.subr.mxu0 0.0
    %165 = vmatpush2.msra.mxu0 %v82
    %166 = vmatprep.subr.mxu0 0.0
    %167 = vmatpush2.msra.mxu0 %v81
    %168 = vmatprep.mubr.f32.mxu0 %v64
    %169 = vmatmul.mubr.f32.gmra.mxu0 %v63
    %v170 = vpop.f32.mrf.mxu0
    %v171 = vadd.f32 %v102, %v170
    %v172 = vpop.f32.mrf.mxu0
    %173 = vdwg.mxu0
    %v174 = vmax.f32 %v171, 0.0
    %v175 = vld [vmem:[#allocation2] sm:$0xff]
    %v176 = vld [vmem:[#allocation2 + $0x8] sm:$0xff]
    %v177 = vld [vmem:[#allocation2 + $0x10] sm:$0xff]
    %v178 = vld [vmem:[#allocation2 + $0x18] sm:$0xff]
    %v179 = vld [vmem:[#allocation2 + $0x20] sm:$0xff]
    %v180 = vld [vmem:[#allocation2 + $0x28] sm:$0xff]
    %v181 = vld [vmem:[#allocation2 + $0x30] sm:$0xff]
    %v182 = vld [vmem:[#allocation2 + $0x38] sm:$0xff]
    %v183 = vld [vmem:[#allocation2 + $0x40] sm:$0xff]
    %v184 = vld [vmem:[#allocation2 + $0x48] sm:$0xff]
    %v185 = vld [vmem:[#allocation2 + $0x50] sm:$0xff]
    %v186 = vld [vmem:[#allocation2 + $0x58] sm:$0xff]
    %v187 = vld [vmem:[#allocation2 + $0x60] sm:$0xff]
    %v188 = vld [vmem:[#allocation2 + $0x68] sm:$0xff]
    %v189 = vld [vmem:[#allocation2 + $0x70] sm:$0xff]
    %v190 = vld [vmem:[#allocation2 + $0x78] sm:$0xff]
    %v191 = vld [vmem:[%s4] sm:$0x1]
    %v193 = vlaneseq
    %v194 = vshrl.u32 %v193, 7
    %v195 = vsub.s32 0, %v194
    %v196 = vrot.slane %v191, %v195
    %198 = vmatprep.subr.mxu0 0.0
    %199 = vmatpush1.msra.mxu0 %v190
    %200 = vmatprep.subr.mxu0 0.0
    %201 = vmatpush1.msra.mxu0 %v189
    %202 = vmatprep.subr.mxu0 0.0
    %203 = vmatpush1.msra.mxu0 %v188
    %204 = vmatprep.subr.mxu0 0.0
    %205 = vmatpush1.msra.mxu0 %v187
    %206 = vmatprep.subr.mxu0 0.0
    %207 = vmatpush1.msra.mxu0 %v186
    %208 = vmatprep.subr.mxu0 0.0
    %209 = vmatpush1.msra.mxu0 %v185
    %210 = vmatprep.subr.mxu0 0.0
    %211 = vmatpush1.msra.mxu0 %v184
    %212 = vmatprep.subr.mxu0 0.0
    %213 = vmatpush1.msra.mxu0 %v183
    %214 = vmatprep.subr.mxu0 0.0
    %215 = vmatpush1.msra.mxu0 %v182
    %216 = vmatprep.subr.mxu0 0.0
    %217 = vmatpush1.msra.mxu0 %v181
    %218 = vmatprep.subr.mxu0 0.0
    %219 = vmatpush1.msra.mxu0 %v180
    %220 = vmatprep.subr.mxu0 0.0
    %221 = vmatpush1.msra.mxu0 %v179
    %222 = vmatprep.subr.mxu0 0.0
    %223 = vmatpush1.msra.mxu0 %v178
    %224 = vmatprep.subr.mxu0 0.0
    %225 = vmatpush1.msra.mxu0 %v177
    %226 = vmatprep.subr.mxu0 0.0
    %227 = vmatpush1.msra.mxu0 %v176
    %228 = vmatprep.subr.mxu0 0.0
    %229 = vmatpush1.msra.mxu0 %v175
    %230 = vmatprep.subr.mxu0 0.0
    %231 = vmatpush2.msra.mxu0 0.0
    %232 = vmatprep.subr.mxu0 0.0
    %233 = vmatpush2.msra.mxu0 0.0
    %234 = vmatprep.subr.mxu0 0.0
    %235 = vmatpush2.msra.mxu0 0.0
    %236 = vmatprep.subr.mxu0 0.0
    %237 = vmatpush2.msra.mxu0 0.0
    %238 = vmatprep.subr.mxu0 0.0
    %239 = vmatpush2.msra.mxu0 0.0
    %240 = vmatprep.subr.mxu0 0.0
    %241 = vmatpush2.msra.mxu0 0.0
    %242 = vmatprep.subr.mxu0 0.0
    %243 = vmatpush2.msra.mxu0 0.0
    %244 = vmatprep.subr.mxu0 0.0
    %245 = vmatpush2.msra.mxu0 0.0
    %246 = vmatprep.subr.mxu0 0.0
    %247 = vmatpush2.msra.mxu0 0.0
    %248 = vmatprep.subr.mxu0 0.0
    %249 = vmatpush2.msra.mxu0 0.0
    %250 = vmatprep.subr.mxu0 0.0
    %251 = vmatpush2.msra.mxu0 0.0
    %252 = vmatprep.subr.mxu0 0.0
    %253 = vmatpush2.msra.mxu0 0.0
    %254 = vmatprep.subr.mxu0 0.0
    %255 = vmatpush2.msra.mxu0 0.0
    %256 = vmatprep.subr.mxu0 0.0
    %257 = vmatpush2.msra.mxu0 0.0
    %258 = vmatprep.subr.mxu0 0.0
    %259 = vmatpush2.msra.mxu0 0.0
    %260 = vmatprep.subr.mxu0 0.0
    %261 = vmatpush2.msra.mxu0 0.0
    %262 = vmatprep.mubr.f32.mxu0 0.0
    %263 = vmatmul.mubr.f32.gmra.mxu0 %v174
    %v264 = vpop.f32.mrf.mxu0
    %v265 = vadd.f32 %v196, %v264
    %v266 = vpop.f32.mrf.mxu0
    %267 = vdwg.mxu0
    %v268 = vmax.f32 %v265, 0.0
    %269 = vst [vmem:[#allocation7] sm:$0xff] %v268
    %v270 = vld [vmem:[#allocation5] sm:$0xff]
    %v271 = vld [vmem:[#allocation5 + $0x8] sm:$0xff]
    %v272 = vld [vmem:[#allocation5 + $0x10] sm:$0xff]
    %v273 = vld [vmem:[#allocation5 + $0x18] sm:$0xff]
    %v274 = vld [vmem:[#allocation5 + $0x20] sm:$0xff]
    %v275 = vld [vmem:[#allocation5 + $0x28] sm:$0xff]
    %v276 = vld [vmem:[#allocation5 + $0x30] sm:$0xff]
    %v277 = vld [vmem:[#allocation5 + $0x38] sm:$0xff]
    %v278 = vld [vmem:[#allocation5 + $0x40] sm:$0xff]
    %v279 = vld [vmem:[#allocation5 + $0x48] sm:$0xff]
    %v280 = vld [vmem:[#allocation5 + $0x50] sm:$0xff]
    %v281 = vld [vmem:[#allocation5 + $0x58] sm:$0xff]
    %v282 = vld [vmem:[#allocation5 + $0x60] sm:$0xff]
    %v283 = vld [vmem:[#allocation5 + $0x68] sm:$0xff]
    %v284 = vld [vmem:[#allocation5 + $0x70] sm:$0xff]
    %v285 = vld [vmem:[#allocation5 + $0x78] sm:$0xff]
    %v286 = vld [vmem:[#allocation5 + $0x80] sm:$0xff]
    %v287 = vld [vmem:[#allocation5 + $0x88] sm:$0xff]
    %v288 = vld [vmem:[#allocation5 + $0x90] sm:$0xff]
    %v289 = vld [vmem:[#allocation5 + $0x98] sm:$0xff]
    %v290 = vld [vmem:[#allocation5 + $0xa0] sm:$0xff]
    %v291 = vld [vmem:[#allocation5 + $0xa8] sm:$0xff]
    %v292 = vld [vmem:[#allocation5 + $0xb0] sm:$0xff]
    %v293 = vld [vmem:[#allocation5 + $0xb8] sm:$0xff]
    %v294 = vld [vmem:[#allocation5 + $0xc0] sm:$0xff]
    %v295 = vld [vmem:[#allocation5 + $0xc8] sm:$0xff]
    %v296 = vld [vmem:[#allocation5 + $0xd0] sm:$0xff]
    %v297 = vld [vmem:[#allocation5 + $0xd8] sm:$0xff]
    %v298 = vld [vmem:[#allocation5 + $0xe0] sm:$0xff]
    %v299 = vld [vmem:[#allocation5 + $0xe8] sm:$0xff]
    %v300 = vld [vmem:[#allocation5 + $0xf0] sm:$0xff]
    %v301 = vld [vmem:[#allocation5 + $0xf8] sm:$0xff]
    %v302 = vld [vmem:[#allocation5 + $0x100] sm:$0xff]
    %v303 = vld [vmem:[#allocation5 + $0x108] sm:$0xff]
    %v304 = vld [vmem:[#allocation5 + $0x110] sm:$0xff]
    %v305 = vld [vmem:[#allocation5 + $0x118] sm:$0xff]
    %v306 = vld [vmem:[#allocation5 + $0x120] sm:$0xff]
    %v307 = vld [vmem:[#allocation5 + $0x128] sm:$0xff]
    %v308 = vld [vmem:[#allocation5 + $0x130] sm:$0xff]
    %v309 = vld [vmem:[#allocation5 + $0x138] sm:$0xff]
    %v310 = vld [vmem:[#allocation5 + $0x140] sm:$0xff]
    %v311 = vld [vmem:[#allocation5 + $0x148] sm:$0xff]
    %v312 = vld [vmem:[#allocation5 + $0x150] sm:$0xff]
    %v313 = vld [vmem:[#allocation5 + $0x158] sm:$0xff]
    %v314 = vld [vmem:[#allocation5 + $0x160] sm:$0xff]
    %v315 = vld [vmem:[#allocation5 + $0x168] sm:$0xff]
    %v316 = vld [vmem:[#allocation5 + $0x170] sm:$0xff]
    %v317 = vld [vmem:[#allocation5 + $0x178] sm:$0xff]
    %v318 = vld [vmem:[%s6] sm:$0x7]
    %v320 = vlaneseq
    %v321 = vshrl.u32 %v320, 7
    %v322 = vsub.s32 0, %v321
    %v323 = vrot.slane %v318, %v322
    %v324 = vlaneseq
    %v325 = vshrl.u32 %v324, 7
    %v326 = vsub.s32 1, %v325
    %v327 = vrot.slane %v318, %v326
    %v328 = vlaneseq
    %v329 = vshrl.u32 %v328, 7
    %v330 = vsub.s32 2, %v329
    %v331 = vrot.slane %v318, %v330
    %335 = vmatprep.subr.mxu0 %v316
    %336 = vmatpush1.msra.mxu0 %v315
    %337 = vmatprep.subr.mxu0 %v313
    %338 = vmatpush1.msra.mxu0 %v312
    %339 = vmatprep.subr.mxu0 %v310
    %340 = vmatpush1.msra.mxu0 %v309
    %341 = vmatprep.subr.mxu0 %v307
    %342 = vmatpush1.msra.mxu0 %v306
    %343 = vmatprep.subr.mxu0 %v304
    %344 = vmatpush1.msra.mxu0 %v303
    %345 = vmatprep.subr.mxu0 %v301
    %346 = vmatpush1.msra.mxu0 %v300
    %347 = vmatprep.subr.mxu0 %v298
    %348 = vmatpush1.msra.mxu0 %v297
    %349 = vmatprep.subr.mxu0 %v295
    %350 = vmatpush1.msra.mxu0 %v294
    %351 = vmatprep.subr.mxu0 %v292
    %352 = vmatpush1.msra.mxu0 %v291
    %353 = vmatprep.subr.mxu0 %v289
    %354 = vmatpush1.msra.mxu0 %v288
    %355 = vmatprep.subr.mxu0 %v286
    %356 = vmatpush1.msra.mxu0 %v285
    %357 = vmatprep.subr.mxu0 %v283
    %358 = vmatpush1.msra.mxu0 %v282
    %359 = vmatprep.subr.mxu0 %v280
    %360 = vmatpush1.msra.mxu0 %v279
    %361 = vmatprep.subr.mxu0 %v277
    %362 = vmatpush1.msra.mxu0 %v276
    %363 = vmatprep.subr.mxu0 %v274
    %364 = vmatpush1.msra.mxu0 %v273
    %365 = vmatprep.subr.mxu0 %v271
    %366 = vmatpush1.msra.mxu0 %v270
    %367 = vmatprep.subr.mxu0 0.0
    %368 = vmatpush2.msra.mxu0 0.0
    %369 = vmatprep.subr.mxu0 0.0
    %370 = vmatpush2.msra.mxu0 0.0
    %371 = vmatprep.subr.mxu0 0.0
    %372 = vmatpush2.msra.mxu0 0.0
    %373 = vmatprep.subr.mxu0 0.0
    %374 = vmatpush2.msra.mxu0 0.0
    %375 = vmatprep.subr.mxu0 0.0
    %376 = vmatpush2.msra.mxu0 0.0
    %377 = vmatprep.subr.mxu0 0.0
    %378 = vmatpush2.msra.mxu0 0.0
    %379 = vmatprep.subr.mxu0 0.0
    %380 = vmatpush2.msra.mxu0 0.0
    %381 = vmatprep.subr.mxu0 0.0
    %382 = vmatpush2.msra.mxu0 0.0
    %383 = vmatprep.subr.mxu0 0.0
    %384 = vmatpush2.msra.mxu0 0.0
    %385 = vmatprep.subr.mxu0 0.0
    %386 = vmatpush2.msra.mxu0 0.0
    %387 = vmatprep.subr.mxu0 0.0
    %388 = vmatpush2.msra.mxu0 0.0
    %389 = vmatprep.subr.mxu0 0.0
    %390 = vmatpush2.msra.mxu0 0.0
    %391 = vmatprep.subr.mxu0 0.0
    %392 = vmatpush2.msra.mxu0 0.0
    %393 = vmatprep.subr.mxu0 0.0
    %394 = vmatpush2.msra.mxu0 0.0
    %395 = vmatprep.subr.mxu0 0.0
    %396 = vmatpush2.msra.mxu0 0.0
    %397 = vmatprep.subr.mxu0 0.0
    %398 = vmatpush2.msra.mxu0 0.0
    %399 = vmatprep.mubr.f32.mxu0 0.0
    %400 = vmatmul.mubr.f32.gmra.mxu0 %v268
    %v401 = vpop.f32.mrf.mxu0
    %v402 = vadd.f32 %v323, %v401
    %v403 = vpop.f32.mrf.mxu0
    %v404 = vadd.f32 %v327, %v403
    %405 = vdwg.mxu0
    %406 = vmatprep.subr.mxu0 0.0
    %407 = vmatpush1.msra.mxu0 %v317
    %408 = vmatprep.subr.mxu0 0.0
    %409 = vmatpush1.msra.mxu0 %v314
    %410 = vmatprep.subr.mxu0 0.0
    %411 = vmatpush1.msra.mxu0 %v311
    %412 = vmatprep.subr.mxu0 0.0
    %413 = vmatpush1.msra.mxu0 %v308
    %414 = vmatprep.subr.mxu0 0.0
    %415 = vmatpush1.msra.mxu0 %v305
    %416 = vmatprep.subr.mxu0 0.0
    %417 = vmatpush1.msra.mxu0 %v302
    %418 = vmatprep.subr.mxu0 0.0
    %419 = vmatpush1.msra.mxu0 %v299
    %420 = vmatprep.subr.mxu0 0.0
    %421 = vmatpush1.msra.mxu0 %v296
    %422 = vmatprep.subr.mxu0 0.0
    %423 = vmatpush1.msra.mxu0 %v293
    %424 = vmatprep.subr.mxu0 0.0
    %425 = vmatpush1.msra.mxu0 %v290
    %426 = vmatprep.subr.mxu0 0.0
    %427 = vmatpush1.msra.mxu0 %v287
    %428 = vmatprep.subr.mxu0 0.0
    %429 = vmatpush1.msra.mxu0 %v284
    %430 = vmatprep.subr.mxu0 0.0
    %431 = vmatpush1.msra.mxu0 %v281
    %432 = vmatprep.subr.mxu0 0.0
    %433 = vmatpush1.msra.mxu0 %v278
    %434 = vmatprep.subr.mxu0 0.0
    %435 = vmatpush1.msra.mxu0 %v275
    %436 = vmatprep.subr.mxu0 0.0
    %437 = vmatpush1.msra.mxu0 %v272
    %438 = vmatprep.subr.mxu0 0.0
    %439 = vmatpush2.msra.mxu0 0.0
    %440 = vmatprep.subr.mxu0 0.0
    %441 = vmatpush2.msra.mxu0 0.0
    %442 = vmatprep.subr.mxu0 0.0
    %443 = vmatpush2.msra.mxu0 0.0
    %444 = vmatprep.subr.mxu0 0.0
    %445 = vmatpush2.msra.mxu0 0.0
    %446 = vmatprep.subr.mxu0 0.0
    %447 = vmatpush2.msra.mxu0 0.0
    %448 = vmatprep.subr.mxu0 0.0
    %449 = vmatpush2.msra.mxu0 0.0
    %450 = vmatprep.subr.mxu0 0.0
    %451 = vmatpush2.msra.mxu0 0.0
    %452 = vmatprep.subr.mxu0 0.0
    %453 = vmatpush2.msra.mxu0 0.0
    %454 = vmatprep.subr.mxu0 0.0
    %455 = vmatpush2.msra.mxu0 0.0
    %456 = vmatprep.subr.mxu0 0.0
    %457 = vmatpush2.msra.mxu0 0.0
    %458 = vmatprep.subr.mxu0 0.0
    %459 = vmatpush2.msra.mxu0 0.0
    %460 = vmatprep.subr.mxu0 0.0
    %461 = vmatpush2.msra.mxu0 0.0
    %462 = vmatprep.subr.mxu0 0.0
    %463 = vmatpush2.msra.mxu0 0.0
    %464 = vmatprep.subr.mxu0 0.0
    %465 = vmatpush2.msra.mxu0 0.0
    %466 = vmatprep.subr.mxu0 0.0
    %467 = vmatpush2.msra.mxu0 0.0
    %468 = vmatprep.subr.mxu0 0.0
    %469 = vmatpush2.msra.mxu0 0.0
    %470 = vmatprep.mubr.f32.mxu0 0.0
    %471 = vmatmul.mubr.f32.gmra.mxu0 %v268
    %v472 = vpop.f32.mrf.mxu0
    %v473 = vadd.f32 %v331, %v472
    %v474 = vpop.f32.mrf.mxu0
    %475 = vdwg.mxu0
    %v476 = vmax.f32 %v402, 0.0
    %v477 = vmax.f32 %v404, 0.0
    %v478 = vld [vmem:[%s7] sm:$0xff]
    %v479 = vld [vmem:[%s7 + $0x8] sm:$0xff]
    %v480 = vld [vmem:[%s7 + $0x10] sm:$0xff]
    %v481 = vld [vmem:[%s7 + $0x18] sm:$0xff]
    %v482 = vld [vmem:[%s7 + $0x20] sm:$0xff]
    %v483 = vld [vmem:[%s7 + $0x28] sm:$0xff]
    %v484 = vld [vmem:[%s7 + $0x30] sm:$0xff]
    %v485 = vld [vmem:[%s7 + $0x38] sm:$0xff]
    %v486 = vld [vmem:[%s7 + $0x40] sm:$0xff]
    %v487 = vld [vmem:[%s7 + $0x48] sm:$0xff]
    %v488 = vld [vmem:[%s7 + $0x50] sm:$0xff]
    %v489 = vld [vmem:[%s7 + $0x58] sm:$0xff]
    %v490 = vld [vmem:[%s7 + $0x60] sm:$0xff]
    %v491 = vld [vmem:[%s7 + $0x68] sm:$0xff]
    %v492 = vld [vmem:[%s7 + $0x70] sm:$0xff]
    %v493 = vld [vmem:[%s7 + $0x78] sm:$0xff]
    %v494 = vld [vmem:[%s7 + $0x80] sm:$0xff]
    %v495 = vld [vmem:[%s7 + $0x88] sm:$0xff]
    %v496 = vld [vmem:[%s7 + $0x90] sm:$0xff]
    %v497 = vld [vmem:[%s7 + $0x98] sm:$0xff]
    %v498 = vld [vmem:[%s7 + $0xa0] sm:$0xff]
    %v499 = vld [vmem:[%s7 + $0xa8] sm:$0xff]
    %v500 = vld [vmem:[%s7 + $0xb0] sm:$0xff]
    %v501 = vld [vmem:[%s7 + $0xb8] sm:$0xff]
    %v502 = vld [vmem:[%s7 + $0xc0] sm:$0xff]
    %v503 = vld [vmem:[%s7 + $0xc8] sm:$0xff]
    %v504 = vld [vmem:[%s7 + $0xd0] sm:$0xff]
    %v505 = vld [vmem:[%s7 + $0xd8] sm:$0xff]
    %v506 = vld [vmem:[%s7 + $0xe0] sm:$0xff]
    %v507 = vld [vmem:[%s7 + $0xe8] sm:$0xff]
    %v508 = vld [vmem:[%s7 + $0xf0] sm:$0xff]
    %v509 = vld [vmem:[%s7 + $0xf8] sm:$0xff]
    %v510 = vld [vmem:[%s8] sm:$0x1]
    %v512 = vlaneseq
    %v513 = vshrl.u32 %v512, 7
    %v514 = vsub.s32 0, %v513
    %v515 = vrot.slane %v510, %v514
    %517 = vmatprep.subr.mxu0 0.0
    %518 = vmatpush1.msra.mxu0 %v493
    %519 = vmatprep.subr.mxu0 0.0
    %520 = vmatpush1.msra.mxu0 %v492
    %521 = vmatprep.subr.mxu0 0.0
    %522 = vmatpush1.msra.mxu0 %v491
    %523 = vmatprep.subr.mxu0 0.0
    %524 = vmatpush1.msra.mxu0 %v490
    %525 = vmatprep.subr.mxu0 0.0
    %526 = vmatpush1.msra.mxu0 %v489
    %527 = vmatprep.subr.mxu0 0.0
    %528 = vmatpush1.msra.mxu0 %v488
    %529 = vmatprep.subr.mxu0 0.0
    %530 = vmatpush1.msra.mxu0 %v487
    %531 = vmatprep.subr.mxu0 0.0
    %532 = vmatpush1.msra.mxu0 %v486
    %533 = vmatprep.subr.mxu0 0.0
    %534 = vmatpush1.msra.mxu0 %v485
    %535 = vmatprep.subr.mxu0 0.0
    %536 = vmatpush1.msra.mxu0 %v484
    %537 = vmatprep.subr.mxu0 0.0
    %538 = vmatpush1.msra.mxu0 %v483
    %539 = vmatprep.subr.mxu0 0.0
    %540 = vmatpush1.msra.mxu0 %v482
    %541 = vmatprep.subr.mxu0 0.0
    %542 = vmatpush1.msra.mxu0 %v481
    %543 = vmatprep.subr.mxu0 0.0
    %544 = vmatpush1.msra.mxu0 %v480
    %545 = vmatprep.subr.mxu0 0.0
    %546 = vmatpush1.msra.mxu0 %v479
    %547 = vmatprep.subr.mxu0 0.0
    %548 = vmatpush1.msra.mxu0 %v478
    %549 = vmatprep.subr.mxu0 0.0
    %550 = vmatpush2.msra.mxu0 %v509
    %551 = vmatprep.subr.mxu0 0.0
    %552 = vmatpush2.msra.mxu0 %v508
    %553 = vmatprep.subr.mxu0 0.0
    %554 = vmatpush2.msra.mxu0 %v507
    %555 = vmatprep.subr.mxu0 0.0
    %556 = vmatpush2.msra.mxu0 %v506
    %557 = vmatprep.subr.mxu0 0.0
    %558 = vmatpush2.msra.mxu0 %v505
    %559 = vmatprep.subr.mxu0 0.0
    %560 = vmatpush2.msra.mxu0 %v504
    %561 = vmatprep.subr.mxu0 0.0
    %562 = vmatpush2.msra.mxu0 %v503
    %563 = vmatprep.subr.mxu0 0.0
    %564 = vmatpush2.msra.mxu0 %v502
    %565 = vmatprep.subr.mxu0 0.0
    %566 = vmatpush2.msra.mxu0 %v501
    %567 = vmatprep.subr.mxu0 0.0
    %568 = vmatpush2.msra.mxu0 %v500
    %569 = vmatprep.subr.mxu0 0.0
    %570 = vmatpush2.msra.mxu0 %v499
    %571 = vmatprep.subr.mxu0 0.0
    %572 = vmatpush2.msra.mxu0 %v498
    %573 = vmatprep.subr.mxu0 0.0
    %574 = vmatpush2.msra.mxu0 %v497
    %575 = vmatprep.subr.mxu0 0.0
    %576 = vmatpush2.msra.mxu0 %v496
    %577 = vmatprep.subr.mxu0 0.0
    %578 = vmatpush2.msra.mxu0 %v495
    %579 = vmatprep.subr.mxu0 0.0
    %580 = vmatpush2.msra.mxu0 %v494
    %581 = vmatprep.mubr.f32.mxu0 %v477
    %582 = vmatmul.mubr.f32.gmra.mxu0 %v476
    %v583 = vpop.f32.mrf.mxu0
    %v584 = vadd.f32 %v515, %v583
    %v585 = vpop.f32.mrf.mxu0
    %586 = vdwg.mxu0
    %v587 = vxor.u32 %v473, 2147483648
    %v588 = vmul.f32 %v587, 1.442695
    %v589 = vpow.pop %v588
    %v590 = vadd.f32 %v589, 1.0
    %v591 = vrcp.pop %v590
    %v592 = vmul.f32 1.0, %v591
    %593 = vst [vmem:[%s10] sm:$0xff] %v592
    %v594 = vxor.u32 %v584, 2147483648
    %v595 = vmul.f32 %v594, 1.442695
    %v596 = vpow.pop %v595
    %v597 = vadd.f32 %v596, 1.0
    %v598 = vrcp.pop %v597
    %v599 = vmul.f32 1.0, %v598
    %vm600 = vcmask 130048
    %601 = vst.msk [vmem:[%s10] sm:$0xff] %vm600, %v599
    // Predicated region
    $region46: #{ethical_reasoning_forward.1} parent=1 // pred_check
      _
    $region47: #{ethical_reasoning_forward.1} parent=1 // pred_check_branch
      %603 = sbr.rel (0) target = $region49
    $region48: #{ethical_reasoning_forward.1} parent=1 // pred_region
      %s605 = ssub.s32 128, 128
      %606 = vsyncadd [#allocation4], %s605
      %s608 = sshll.u32 [#allocation7], 4
      %s609 = int_to_ptr.vmem [resolvable:$true] %s608
      %611 = dma.vmem_to_hbm [thread:$0]  %s609, 128, %s9, [#allocation4]
    $region49: #{ethical_reasoning_forward.1} parent=1 // pred_fallthru
      _
    // Predicated region
    $region50: #{ethical_reasoning_forward.1} parent=1 // pred_check
      _
    $region51: #{ethical_reasoning_forward.1} parent=1 // pred_check_branch
      %613 = sbr.rel (0) target = $region53
    $region52: #{ethical_reasoning_forward.1} parent=1 // pred_region
      _
    $region53: #{ethical_reasoning_forward.1} parent=1 // pred_fallthru
      _
    // Predicated region
    $region54: #{ethical_reasoning_forward.1} parent=1 // pred_check
      _
    $region55: #{ethical_reasoning_forward.1} parent=1 // pred_check_branch
      %615 = sbr.rel (0) target = $region57
    $region56: #{ethical_reasoning_forward.1} parent=1 // pred_region
      %616 = dma.done [#allocation4], 128
    $region57: #{ethical_reasoning_forward.1} parent=1 // pred_fallthru
      _
    // Predicated region
    $region58: #{ethical_reasoning_forward.1} parent=1 // pred_check
      _
    $region59: #{ethical_reasoning_forward.1} parent=1 // pred_check_branch
      %618 = sbr.rel (0) target = $region61
    $region60: #{ethical_reasoning_forward.1} parent=1 // pred_region
      _
    $region61: #{ethical_reasoning_forward.1} parent=1 // pred_fallthru
      _
    %619 = vsyncpa [#allocation3], 1
    %620 = vsyncpa [#allocation6], 1
    %621 = vsyncpa [#allocation4], 1

</llo_original>
